<compile_context>
chip_gen: v6e
topology: v6e:2x2x1
jax: 0.10.0
libtpu: 0.0.40
codegen_flags: <defaults>
</compile_context>

<pallas_src>
import functools

import jax
import jax.numpy as jnp
from jax import lax
from jax.experimental import pallas as pl
from jax.experimental.pallas import tpu as pltpu

HIDDEN = 32        # hidden-layer-width from nn_config.yaml (synthetic choice)
DEPTH = 3          # depth from nn_config.yaml (synthetic choice)
IN_FEATURES = 16
OUT_FEATURES = 1

# TODO(synk): the PyTorch module reads hidden-layer-width/depth from a local
# YAML file; constants above stand in for that config read.


def mlp_kernel(x_ref, w0t_ref, w1t_ref, w2t_ref, wf_ref,
               b0_ref, b1_ref, b2_ref, bf_ref, o_ref):
    """Whole MLP forward for one batch tile, fully in VMEM.

    x_ref  : (bt, 16)  float32, native PyTorch layout (batch on sublanes)
    w*t_ref: pre-transposed weights in compute dtype (f32 or bf16)
             w0t (32,16), w1t (32,32), w2t (32,32), wf (32,1)
    b*_ref : float32 biases, b0/b1/b2 (32,1), bf (1,1)
    o_ref  : (1, bt)   float32, lane-dense output slab (batch on lanes)
    """
    cdt = w0t_ref.dtype                                   # compute dtype
    x = x_ref[...].astype(cdt)                            # (bt, 16)

    # Layer 0 (no activation): contract both minor dims -> (32, bt).
    # Equivalent to W0^T @ x^T; puts the batch on lanes for the rest of the net.
    h = lax.dot_general(
        w0t_ref[...], x,
        dimension_numbers=(((1,), (1,)), ((), ())),
        preferred_element_type=jnp.float32) + b0_ref[...]                 # (32, bt) f32

    # Hidden Linear + ReLU blocks (depth - 1 = 2); f32 accumulation + epilogue.
    h = jnp.maximum(
        jnp.dot(w1t_ref[...], h.astype(cdt),
                preferred_element_type=jnp.float32) + b1_ref[...], 0.0)
    h = jnp.maximum(
        jnp.dot(w2t_ref[...], h.astype(cdt),
                preferred_element_type=jnp.float32) + b2_ref[...], 0.0)

    # Final Linear(32 -> 1) as a lane-dense multiply + sublane reduction (XLU).
    wf = wf_ref[...].astype(jnp.float32)                                  # (32, 1)
    out = jnp.sum(h * wf, axis=0, keepdims=True) + bf_ref[...]            # (1, bt)
    o_ref[...] = out.astype(o_ref.dtype)


def init_params(key):
    """PyTorch-style Linear init: U(-1/sqrt(fan_in), 1/sqrt(fan_in))."""
    def linear(k, fan_in, fan_out):
        kw, kb = jax.random.split(k)
        bound = 1.0 / jnp.sqrt(jnp.float32(fan_in))
        w = jax.random.uniform(kw, (fan_in, fan_out), jnp.float32, -bound, bound)
        b = jax.random.uniform(kb, (1, fan_out), jnp.float32, -bound, bound)
        return w, b

    k0, k1, k2, kf = jax.random.split(key, 4)
    w0, b0 = linear(k0, IN_FEATURES, HIDDEN)
    w1, b1 = linear(k1, HIDDEN, HIDDEN)
    w2, b2 = linear(k2, HIDDEN, HIDDEN)
    wf, bf = linear(kf, HIDDEN, OUT_FEATURES)
    return (w0, b0, w1, b1, w2, b2, wf, bf)


def prepare_params(params, compute_dtype=jnp.float32):
    """Pre-transpose weights (compute dtype) and shape biases (float32).

    Weights feed the MXU in `compute_dtype` (f32, or bf16 on v6e/v7x to shrink
    traffic and run true bf16 pushes); biases stay float32 so the epilogue is
    exact on every chip.
    """
    w0, b0, w1, b1, w2, b2, wf, bf = params
    return (
        jnp.asarray(w0.T, compute_dtype),                 # (32, 16)
        jnp.asarray(w1.T, compute_dtype),                 # (32, 32)
        jnp.asarray(w2.T, compute_dtype),                 # (32, 32)
        jnp.asarray(wf, compute_dtype),                   # (32, 1)
        jnp.asarray(b0.reshape(HIDDEN, 1), jnp.float32),
        jnp.asarray(b1.reshape(HIDDEN, 1), jnp.float32),
        jnp.asarray(b2.reshape(HIDDEN, 1), jnp.float32),
        jnp.asarray(bf.reshape(1, 1), jnp.float32),
    )


@functools.partial(jax.jit, static_argnames=("batch_tile",))
def train_nn_forward(x, prepared_params, *, batch_tile=8192):
    """x: (B, IN_FEATURES) float32 (native PyTorch layout). Returns (B, 1) f32."""
    w0t, w1t, w2t, wf, b0, b1, b2, bf = prepared_params

    B = x.shape[0]
    bt = min(batch_tile, B)
    assert B % bt == 0, "batch must be divisible by the batch tile"
    assert bt % 128 == 0 or bt == B, "batch tile must be lane-aligned (mult of 128)"
    assert bt <= 16384, "keep the tile within the 32 MiB VMEM budget on all chips"

    const = lambda i: (0, 0)     # parameters: fetched once, never re-DMA'd
    cost = pl.CostEstimate(
        flops=2 * 2592 * B,                      # 16*32 + 32*32 + 32*32 + 32*1 MACs/sample
        transcendentals=0,
        bytes_accessed=(IN_FEATURES + OUT_FEATURES) * 4 * B + 10 * 1024,
    )

    out = pl.pallas_call(
        mlp_kernel,
        out_shape=jax.ShapeDtypeStruct((OUT_FEATURES, B), jnp.float32),
        grid_spec=pltpu.PrefetchScalarGridSpec(
            num_scalar_prefetch=0,
            grid=(B // bt,),
            in_specs=[
                pl.BlockSpec((bt, IN_FEATURES), lambda i: (i, 0)),   # x, native layout
                pl.BlockSpec((HIDDEN, IN_FEATURES), const),          # w0t
                pl.BlockSpec((HIDDEN, HIDDEN), const),               # w1t
                pl.BlockSpec((HIDDEN, HIDDEN), const),               # w2t
                pl.BlockSpec((HIDDEN, OUT_FEATURES), const),         # wf
                pl.BlockSpec((HIDDEN, 1), const),                    # b0
                pl.BlockSpec((HIDDEN, 1), const),                    # b1
                pl.BlockSpec((HIDDEN, 1), const),                    # b2
                pl.BlockSpec((1, 1), const),                         # bf
            ],
            out_specs=pl.BlockSpec((OUT_FEATURES, bt), lambda i: (0, i)),
        ),
        compiler_params=pltpu.CompilerParams(
            dimension_semantics=("parallel",),        # shards grid across TCs on v7x
            vmem_limit_bytes=32 * 1024 * 1024,        # >= scoped default everywhere,
        ),                                            # well under 64 MiB v7x physical
        cost_estimate=cost,
    )(x, w0t, w1t, w2t, wf, b0, b1, b2, bf)

    # (1, B) row-major has identical element order to (B, 1): free reshape.
    return out.reshape(B, OUT_FEATURES)


def reference_forward(x, params):
    """Pure-JAX reference replicating the PyTorch Sequential exactly."""
    w0, b0, w1, b1, w2, b2, wf, bf = params
    h = x @ w0 + b0
    h = jnp.maximum(h @ w1 + b1, 0.0)
    h = jnp.maximum(h @ w2 + b2, 0.0)
    return h @ wf + bf


if __name__ == "__main__":
    key = jax.random.PRNGKey(0)
    kx, kp = jax.random.split(key)

    B = 512                                    # small demo batch, 2 lane-dense tiles
    x = jax.random.normal(kx, (B, IN_FEATURES), dtype=jnp.float32)
    params = init_params(kp)
    y_ref = reference_forward(x, params)

    # float32 path: exact match to the reference.
    prepared_f32 = prepare_params(params, jnp.float32)
    y = train_nn_forward(x, prepared_f32, batch_tile=256)   # 2 parallel grid steps
    jax.block_until_ready(y)
    assert y.shape == (B, OUT_FEATURES)
    assert jnp.allclose(y, y_ref, atol=1e-5, rtol=1e-5), "f32 mismatch vs reference"

    # bf16 matmul-operand path (v6e/v7x lever); accumulation/epilogue stay f32.
    prepared_bf16 = prepare_params(params, jnp.bfloat16)
    y16 = train_nn_forward(x, prepared_bf16, batch_tile=256)
    jax.block_until_ready(y16)
    tol = 5e-2 * float(jnp.max(jnp.abs(y_ref))) + 1e-3
    assert float(jnp.max(jnp.abs(y16 - y_ref))) < tol, "bf16 mismatch vs reference"

    # Single-tile path (bt == B) exercising the default large-tile configuration.
    y_big = train_nn_forward(x, prepared_f32)               # batch_tile=8192 -> bt=B
    jax.block_until_ready(y_big)
    assert jnp.allclose(y_big, y_ref, atol=1e-5, rtol=1e-5), "single-tile mismatch"

    print("KERNEL_OK")
</pallas_src>

<mosaic_0001>
module attributes {stable_mosaic.version = 11 : i64} {
  func.func @mlp_kernel(%arg0: i32, %arg1: memref<256x16xf32, #tpu.memory_space<vmem>>, %arg2: memref<32x16xf32, #tpu.memory_space<vmem>>, %arg3: memref<32x32xf32, #tpu.memory_space<vmem>>, %arg4: memref<32x32xf32, #tpu.memory_space<vmem>>, %arg5: memref<32x1xf32, #tpu.memory_space<vmem>>, %arg6: memref<32x1xf32, #tpu.memory_space<vmem>>, %arg7: memref<32x1xf32, #tpu.memory_space<vmem>>, %arg8: memref<32x1xf32, #tpu.memory_space<vmem>>, %arg9: memref<1x1xf32, #tpu.memory_space<vmem>>, %arg10: memref<1x256xf32, #tpu.memory_space<vmem>>) attributes {dimension_semantics = [#tpu.dimension_semantics<parallel>], iteration_bounds = array<i64: 2>, scalar_prefetch = 0 : i64, scratch_operands = 0 : i64, tpu.core_type = #tpu.core_type<tc>, window_params = [{transform_indices = @transform_0, window_bounds = array<i64: 256, 16>}, {pipeline_mode = #tpu.pipeline_mode<synchronous>, transform_indices = @transform_1, window_bounds = array<i64: 32, 16>}, {pipeline_mode = #tpu.pipeline_mode<synchronous>, transform_indices = @transform_2, window_bounds = array<i64: 32, 32>}, {pipeline_mode = #tpu.pipeline_mode<synchronous>, transform_indices = @transform_3, window_bounds = array<i64: 32, 32>}, {pipeline_mode = #tpu.pipeline_mode<synchronous>, transform_indices = @transform_4, window_bounds = array<i64: 32, 1>}, {pipeline_mode = #tpu.pipeline_mode<synchronous>, transform_indices = @transform_5, window_bounds = array<i64: 32, 1>}, {pipeline_mode = #tpu.pipeline_mode<synchronous>, transform_indices = @transform_6, window_bounds = array<i64: 32, 1>}, {pipeline_mode = #tpu.pipeline_mode<synchronous>, transform_indices = @transform_7, window_bounds = array<i64: 32, 1>}, {pipeline_mode = #tpu.pipeline_mode<synchronous>, transform_indices = @transform_8, window_bounds = array<i64: 1, 1>}, {transform_indices = @transform_9, window_bounds = array<i64: 1, 256>}]} {
    %c0 = arith.constant 0 : index
    %c0_0 = arith.constant 0 : index
    %0 = vector.load %arg1[%c0, %c0_0] : memref<256x16xf32, #tpu.memory_space<vmem>>, vector<256x16xf32>
    %c0_1 = arith.constant 0 : index
    %c0_2 = arith.constant 0 : index
    %1 = vector.load %arg2[%c0_1, %c0_2] : memref<32x16xf32, #tpu.memory_space<vmem>>, vector<32x16xf32>
    %cst = arith.constant dense<0.000000e+00> : vector<32x256xf32>
    %2 = tpu.matmul %1, %0, %cst {dimension_numbers = #tpu.dot_dimension_numbers<[1], [1], [0], [0], [0, 0, 1, 0], [], []>} : vector<32x16xf32>, vector<256x16xf32>, vector<32x256xf32> -> vector<32x256xf32>
    %c0_3 = arith.constant 0 : index
    %c0_4 = arith.constant 0 : index
    %3 = vector.load %arg6[%c0_3, %c0_4] : memref<32x1xf32, #tpu.memory_space<vmem>>, vector<32x1xf32>
    %4 = vector.broadcast %3 : vector<32x1xf32> to vector<32x256xf32>
    %5 = arith.addf %2, %4 : vector<32x256xf32>
    %c0_5 = arith.constant 0 : index
    %c0_6 = arith.constant 0 : index
    %6 = vector.load %arg3[%c0_5, %c0_6] : memref<32x32xf32, #tpu.memory_space<vmem>>, vector<32x32xf32>
    %cst_7 = arith.constant dense<0.000000e+00> : vector<32x256xf32>
    %7 = tpu.matmul %6, %5, %cst_7 {dimension_numbers = #tpu.dot_dimension_numbers<[1], [0], [0], [1], [0, 0, 1, 1], [], []>} : vector<32x32xf32>, vector<32x256xf32>, vector<32x256xf32> -> vector<32x256xf32>
    %c0_8 = arith.constant 0 : index
    %c0_9 = arith.constant 0 : index
    %8 = vector.load %arg7[%c0_8, %c0_9] : memref<32x1xf32, #tpu.memory_space<vmem>>, vector<32x1xf32>
    %9 = vector.broadcast %8 : vector<32x1xf32> to vector<32x256xf32>
    %10 = arith.addf %7, %9 : vector<32x256xf32>
    %cst_10 = arith.constant 0.000000e+00 : f32
    %11 = vector.broadcast %cst_10 : f32 to vector<32x256xf32>
    %12 = arith.maximumf %10, %11 : vector<32x256xf32>
    %c0_11 = arith.constant 0 : index
    %c0_12 = arith.constant 0 : index
    %13 = vector.load %arg4[%c0_11, %c0_12] : memref<32x32xf32, #tpu.memory_space<vmem>>, vector<32x32xf32>
    %cst_13 = arith.constant dense<0.000000e+00> : vector<32x256xf32>
    %14 = tpu.matmul %13, %12, %cst_13 {dimension_numbers = #tpu.dot_dimension_numbers<[1], [0], [0], [1], [0, 0, 1, 1], [], []>} : vector<32x32xf32>, vector<32x256xf32>, vector<32x256xf32> -> vector<32x256xf32>
    %c0_14 = arith.constant 0 : index
    %c0_15 = arith.constant 0 : index
    %15 = vector.load %arg8[%c0_14, %c0_15] : memref<32x1xf32, #tpu.memory_space<vmem>>, vector<32x1xf32>
    %16 = vector.broadcast %15 : vector<32x1xf32> to vector<32x256xf32>
    %17 = arith.addf %14, %16 : vector<32x256xf32>
    %cst_16 = arith.constant 0.000000e+00 : f32
    %18 = vector.broadcast %cst_16 : f32 to vector<32x256xf32>
    %19 = arith.maximumf %17, %18 : vector<32x256xf32>
    %c0_17 = arith.constant 0 : index
    %c0_18 = arith.constant 0 : index
    %20 = vector.load %arg5[%c0_17, %c0_18] : memref<32x1xf32, #tpu.memory_space<vmem>>, vector<32x1xf32>
    %21 = vector.broadcast %20 : vector<32x1xf32> to vector<32x256xf32>
    %22 = arith.mulf %19, %21 : vector<32x256xf32>
    %cst_19 = arith.constant dense<0.000000e+00> : vector<256xf32>
    %23 = vector.multi_reduction <add>, %22, %cst_19 [0] : vector<32x256xf32> to vector<256xf32>
    %24 = vector.shape_cast %23 : vector<256xf32> to vector<1x256xf32>
    %c0_20 = arith.constant 0 : index
    %c0_21 = arith.constant 0 : index
    %25 = vector.load %arg9[%c0_20, %c0_21] : memref<1x1xf32, #tpu.memory_space<vmem>>, vector<1x1xf32>
    %26 = vector.broadcast %25 : vector<1x1xf32> to vector<1x256xf32>
    %27 = arith.addf %24, %26 : vector<1x256xf32>
    %c0_22 = arith.constant 0 : index
    %c0_23 = arith.constant 0 : index
    %28 = vector.load %arg10[%c0_22, %c0_23] : memref<1x256xf32, #tpu.memory_space<vmem>>, vector<1x256xf32>
    tpu.vector_store %arg10[%c0_22, %c0_23], %27 {strides = array<i32>} : memref<1x256xf32, #tpu.memory_space<vmem>>, vector<1x256xf32>,
    return
  }
  func.func @transform_0(%arg0: i32) -> (i32, i32) {
    %c0_i32 = arith.constant 0 : i32
    %c0_i32_0 = arith.constant 0 : i32
    return %arg0, %c0_i32 : i32, i32
  }
  func.func @transform_1(%arg0: i32) -> (i32, i32) {
    %c0_i32 = arith.constant 0 : i32
    %c0_i32_0 = arith.constant 0 : i32
    %c0_i32_1 = arith.constant 0 : i32
    return %c0_i32, %c0_i32_0 : i32, i32
  }
  func.func @transform_2(%arg0: i32) -> (i32, i32) {
    %c0_i32 = arith.constant 0 : i32
    %c0_i32_0 = arith.constant 0 : i32
    %c0_i32_1 = arith.constant 0 : i32
    return %c0_i32, %c0_i32_0 : i32, i32
  }
  func.func @transform_3(%arg0: i32) -> (i32, i32) {
    %c0_i32 = arith.constant 0 : i32
    %c0_i32_0 = arith.constant 0 : i32
    %c0_i32_1 = arith.constant 0 : i32
    return %c0_i32, %c0_i32_0 : i32, i32
  }
  func.func @transform_4(%arg0: i32) -> (i32, i32) {
    %c0_i32 = arith.constant 0 : i32
    %c0_i32_0 = arith.constant 0 : i32
    %c0_i32_1 = arith.constant 0 : i32
    return %c0_i32, %c0_i32_0 : i32, i32
  }
  func.func @transform_5(%arg0: i32) -> (i32, i32) {
    %c0_i32 = arith.constant 0 : i32
    %c0_i32_0 = arith.constant 0 : i32
    %c0_i32_1 = arith.constant 0 : i32
    return %c0_i32, %c0_i32_0 : i32, i32
  }
  func.func @transform_6(%arg0: i32) -> (i32, i32) {
    %c0_i32 = arith.constant 0 : i32
    %c0_i32_0 = arith.constant 0 : i32
    %c0_i32_1 = arith.constant 0 : i32
    return %c0_i32, %c0_i32_0 : i32, i32
  }
  func.func @transform_7(%arg0: i32) -> (i32, i32) {
    %c0_i32 = arith.constant 0 : i32
    %c0_i32_0 = arith.constant 0 : i32
    %c0_i32_1 = arith.constant 0 : i32
    return %c0_i32, %c0_i32_0 : i32, i32
  }
  func.func @transform_8(%arg0: i32) -> (i32, i32) {
    %c0_i32 = arith.constant 0 : i32
    %c0_i32_0 = arith.constant 0 : i32
    %c0_i32_1 = arith.constant 0 : i32
    return %c0_i32, %c0_i32_0 : i32, i32
  }
  func.func @transform_9(%arg0: i32) -> (i32, i32) {
    %c0_i32 = arith.constant 0 : i32
    %c0_i32_0 = arith.constant 0 : i32
    return %c0_i32, %arg0 : i32, i32
  }
}

</mosaic_0001>

<llo_original>
// kernel: train_nn_forward.1
$region0: #{train_nn_forward.1}
  #allocation0 [shape = 'u32[]', space=smem, size = 0x4, offset = 0x4, fixed_abs, tag = 'smem constant byte address 0x4 - core index']
  #allocation1 [shape = 'u32[144,128]{1,0:T(1,128)}', space=vmem, size = 0x12000, scoped, tag = 'internal scratch']
  #allocation2 [shape = 'f32[1,1]{1,0:T(1,128)S(1)}', space=vmem, size = 0x200, scoped, tag = 'scoped memory for train_nn_forward.1']
  %s0 = inlined_call_operand.vmem [shape: f32[512,16], index: 0, kind: input, shape index: {}]
  %s1 = inlined_call_operand.vmem [shape: f32[32,16], index: 1, kind: input, shape index: {}]
  %s2 = inlined_call_operand.vmem [shape: f32[32,32], index: 2, kind: input, shape index: {}]
  %s3 = inlined_call_operand.vmem [shape: f32[32,32], index: 3, kind: input, shape index: {}]
  %s4 = inlined_call_operand.vmem [shape: f32[32,1], index: 4, kind: input, shape index: {}]
  %s5 = inlined_call_operand.vmem [shape: f32[32,1], index: 5, kind: input, shape index: {}]
  %s6 = inlined_call_operand.vmem [shape: f32[32,1], index: 6, kind: input, shape index: {}]
  %s7 = inlined_call_operand.vmem [shape: f32[32,1], index: 7, kind: input, shape index: {}]
  %s8 = inlined_call_operand.<no memory space> [shape: f32[1,1], index: 8, kind: input, shape index: {}]
  %s9 = inlined_call_operand.hbm [shape: f32[1,512], index: 9, kind: output, shape index: {}]
  %s10 = sld [smem:[#allocation0]]
  $region69: #{train_nn_forward.1} parent=0
    _
  %s12 = ssub.s32 1, %s10
  %s13 = scalar_select 0, %s12, %s10
  %v14 = vstv %s8
  %15 = vst [vmem:[#allocation2] sm:$0x1] %v14
  $region1: #{train_nn_forward.1} parent=0
    #allocation3 [shape = 'u8[2048]{0}', space=vmem, size = 0x800, scoped, tag = 'output window, operand 0']
    #allocation4 [shape = 's32[2]{0}', space=sflag, size = 0x8, scoped, tag = 'scoped memory for train_nn_forward.1']
    %16 = vsyncpa [#allocation4], 0
    %s17 = scalar_lea.sflag [#allocation4], 1
    %18 = vsyncpa %s17, 0
    loop: start=0, step=1, limit=4
    $region2: #{train_nn_forward.1} parent=1 // loop_pre_header
      _
    $region3: #{train_nn_forward.1} parent=1 // loop_header
      %s20 = sphi 0, %s24
      %p21 = scmp.ge.s32.totalorder %s20, 4
      %s30 = sphi 0, %s32
      %s33 = sphi 0, %s30
      %s34 = sphi 0, %s33
      %s50 = sphi 0, %s34
      %s54 = sphi 0, %s54
      %s56 = sphi 0, %s54
      %s57 = sphi 0, %s56
      %s71 = sphi 0, %s57
      %s75 = sphi 0, %s75
      %s77 = sphi 0, %s75
      %s78 = sphi 0, %s77
      %s92 = sphi 0, %s78
      %s96 = sphi 0, %s96
      %s98 = sphi 0, %s96
      %s99 = sphi 0, %s98
      %s113 = sphi 0, %s99
      %s117 = sphi 0, %s117
      %s119 = sphi 0, %s117
      %s120 = sphi 0, %s119
      %s134 = sphi 0, %s120
      %s138 = sphi 0, %s138
      %s140 = sphi 0, %s138
      %s141 = sphi 0, %s140
      %s155 = sphi 0, %s141
      %s159 = sphi 0, %s159
      %s161 = sphi 0, %s159
      %s162 = sphi 0, %s161
      %s176 = sphi 0, %s162
      %s180 = sphi 0, %s180
      %s182 = sphi 0, %s180
      %s183 = sphi 0, %s182
      %s197 = sphi 0, %s183
      %s201 = sphi 0, %s201
      %s203 = sphi 0, %s201
      %s204 = sphi 0, %s203
      %s218 = sphi 0, %s204
      %s224 = sphi 0, %s226
      %s227 = sphi 0, %s224
      %s228 = sphi 0, %s227
      %s244 = sphi 0, %s228
    $region4: #{train_nn_forward.1} parent=1 // loop_header_branch
      %23 = sbr.rel (%p21) target = $region8
    $region5: #{train_nn_forward.1} parent=1 // loop_body
      %s25 = ssub.s32 %s20, 1
      %s26 = ssub.s32 %s20, 2
      %s27 = sadd.s32 %s20, 1
      %s28 = ssub.s32 %s20, %s27
      %p29 = scmp.eq.s32.totalorder %s28, 0
      %s31 = sadd.s32 %s30, 1
      %s32 = scalar_select %p29, %s30, %s31
      %p35 = pneg %p29
      %p36 = scmp.eq.s32.totalorder %s20, 1
      %p37 = por %p35, %p36
      %p38 = scmp.ne.s32.totalorder %s30, %s33
      %p39 = scmp.eq.s32.totalorder %s20, 0
      %p40 = por %p38, %p39
      %p41 = scmp.ne.s32.totalorder %s30, %s33
      %p42 = scmp.eq.s32.totalorder %s25, 1
      %p43 = por %p41, %p42
      %p44 = scmp.ne.s32.totalorder %s33, %s34
      %p45 = scmp.eq.s32.totalorder %s25, 0
      %p46 = por %p44, %p45
      %p47 = scmp.ne.s32.totalorder %s33, %s34
      %p48 = scmp.eq.s32.totalorder %s26, 1
      %p49 = por %p47, %p48
      %p51 = scmp.ne.s32.totalorder %s34, %s50
      %p52 = scmp.eq.s32.totalorder %s26, 0
      %p53 = por %p51, %p52
      %s55 = sadd.s32 %s54, 1
      %p58 = scmp.eq.s32.totalorder %s20, 1
      %p59 = scmp.ne.s32.totalorder %s54, %s56
      %p60 = scmp.eq.s32.totalorder %s20, 0
      %p61 = por %p59, %p60
      %p62 = scmp.ne.s32.totalorder %s54, %s56
      %p63 = scmp.eq.s32.totalorder %s25, 1
      %p64 = por %p62, %p63
      %p65 = scmp.ne.s32.totalorder %s56, %s57
      %p66 = scmp.eq.s32.totalorder %s25, 0
      %p67 = por %p65, %p66
      %p68 = scmp.ne.s32.totalorder %s56, %s57
      %p69 = scmp.eq.s32.totalorder %s26, 1
      %p70 = por %p68, %p69
      %p72 = scmp.ne.s32.totalorder %s57, %s71
      %p73 = scmp.eq.s32.totalorder %s26, 0
      %p74 = por %p72, %p73
      %s76 = sadd.s32 %s75, 1
      %p79 = scmp.eq.s32.totalorder %s20, 1
      %p80 = scmp.ne.s32.totalorder %s75, %s77
      %p81 = scmp.eq.s32.totalorder %s20, 0
      %p82 = por %p80, %p81
      %p83 = scmp.ne.s32.totalorder %s75, %s77
      %p84 = scmp.eq.s32.totalorder %s25, 1
      %p85 = por %p83, %p84
      %p86 = scmp.ne.s32.totalorder %s77, %s78
      %p87 = scmp.eq.s32.totalorder %s25, 0
      %p88 = por %p86, %p87
      %p89 = scmp.ne.s32.totalorder %s77, %s78
      %p90 = scmp.eq.s32.totalorder %s26, 1
      %p91 = por %p89, %p90
      %p93 = scmp.ne.s32.totalorder %s78, %s92
      %p94 = scmp.eq.s32.totalorder %s26, 0
      %p95 = por %p93, %p94
      %s97 = sadd.s32 %s96, 1
      %p100 = scmp.eq.s32.totalorder %s20, 1
      %p101 = scmp.ne.s32.totalorder %s96, %s98
      %p102 = scmp.eq.s32.totalorder %s20, 0
      %p103 = por %p101, %p102
      %p104 = scmp.ne.s32.totalorder %s96, %s98
      %p105 = scmp.eq.s32.totalorder %s25, 1
      %p106 = por %p104, %p105
      %p107 = scmp.ne.s32.totalorder %s98, %s99
      %p108 = scmp.eq.s32.totalorder %s25, 0
      %p109 = por %p107, %p108
      %p110 = scmp.ne.s32.totalorder %s98, %s99
      %p111 = scmp.eq.s32.totalorder %s26, 1
      %p112 = por %p110, %p111
      %p114 = scmp.ne.s32.totalorder %s99, %s113
      %p115 = scmp.eq.s32.totalorder %s26, 0
      %p116 = por %p114, %p115
      %s118 = sadd.s32 %s117, 1
      %p121 = scmp.eq.s32.totalorder %s20, 1
      %p122 = scmp.ne.s32.totalorder %s117, %s119
      %p123 = scmp.eq.s32.totalorder %s20, 0
      %p124 = por %p122, %p123
      %p125 = scmp.ne.s32.totalorder %s117, %s119
      %p126 = scmp.eq.s32.totalorder %s25, 1
      %p127 = por %p125, %p126
      %p128 = scmp.ne.s32.totalorder %s119, %s120
      %p129 = scmp.eq.s32.totalorder %s25, 0
      %p130 = por %p128, %p129
      %p131 = scmp.ne.s32.totalorder %s119, %s120
      %p132 = scmp.eq.s32.totalorder %s26, 1
      %p133 = por %p131, %p132
      %p135 = scmp.ne.s32.totalorder %s120, %s134
      %p136 = scmp.eq.s32.totalorder %s26, 0
      %p137 = por %p135, %p136
      %s139 = sadd.s32 %s138, 1
      %p142 = scmp.eq.s32.totalorder %s20, 1
      %p143 = scmp.ne.s32.totalorder %s138, %s140
      %p144 = scmp.eq.s32.totalorder %s20, 0
      %p145 = por %p143, %p144
      %p146 = scmp.ne.s32.totalorder %s138, %s140
      %p147 = scmp.eq.s32.totalorder %s25, 1
      %p148 = por %p146, %p147
      %p149 = scmp.ne.s32.totalorder %s140, %s141
      %p150 = scmp.eq.s32.totalorder %s25, 0
      %p151 = por %p149, %p150
      %p152 = scmp.ne.s32.totalorder %s140, %s141
      %p153 = scmp.eq.s32.totalorder %s26, 1
      %p154 = por %p152, %p153
      %p156 = scmp.ne.s32.totalorder %s141, %s155
      %p157 = scmp.eq.s32.totalorder %s26, 0
      %p158 = por %p156, %p157
      %s160 = sadd.s32 %s159, 1
      %p163 = scmp.eq.s32.totalorder %s20, 1
      %p164 = scmp.ne.s32.totalorder %s159, %s161
      %p165 = scmp.eq.s32.totalorder %s20, 0
      %p166 = por %p164, %p165
      %p167 = scmp.ne.s32.totalorder %s159, %s161
      %p168 = scmp.eq.s32.totalorder %s25, 1
      %p169 = por %p167, %p168
      %p170 = scmp.ne.s32.totalorder %s161, %s162
      %p171 = scmp.eq.s32.totalorder %s25, 0
      %p172 = por %p170, %p171
      %p173 = scmp.ne.s32.totalorder %s161, %s162
      %p174 = scmp.eq.s32.totalorder %s26, 1
      %p175 = por %p173, %p174
      %p177 = scmp.ne.s32.totalorder %s162, %s176
      %p178 = scmp.eq.s32.totalorder %s26, 0
      %p179 = por %p177, %p178
      %s181 = sadd.s32 %s180, 1
      %p184 = scmp.eq.s32.totalorder %s20, 1
      %p185 = scmp.ne.s32.totalorder %s180, %s182
      %p186 = scmp.eq.s32.totalorder %s20, 0
      %p187 = por %p185, %p186
      %p188 = scmp.ne.s32.totalorder %s180, %s182
      %p189 = scmp.eq.s32.totalorder %s25, 1
      %p190 = por %p188, %p189
      %p191 = scmp.ne.s32.totalorder %s182, %s183
      %p192 = scmp.eq.s32.totalorder %s25, 0
      %p193 = por %p191, %p192
      %p194 = scmp.ne.s32.totalorder %s182, %s183
      %p195 = scmp.eq.s32.totalorder %s26, 1
      %p196 = por %p194, %p195
      %p198 = scmp.ne.s32.totalorder %s183, %s197
      %p199 = scmp.eq.s32.totalorder %s26, 0
      %p200 = por %p198, %p199
      %s202 = sadd.s32 %s201, 1
      %p205 = scmp.eq.s32.totalorder %s20, 1
      %p206 = scmp.ne.s32.totalorder %s201, %s203
      %p207 = scmp.eq.s32.totalorder %s20, 0
      %p208 = por %p206, %p207
      %p209 = scmp.ne.s32.totalorder %s201, %s203
      %p210 = scmp.eq.s32.totalorder %s25, 1
      %p211 = por %p209, %p210
      %p212 = scmp.ne.s32.totalorder %s203, %s204
      %p213 = scmp.eq.s32.totalorder %s25, 0
      %p214 = por %p212, %p213
      %p215 = scmp.ne.s32.totalorder %s203, %s204
      %p216 = scmp.eq.s32.totalorder %s26, 1
      %p217 = por %p215, %p216
      %p219 = scmp.ne.s32.totalorder %s204, %s218
      %p220 = scmp.eq.s32.totalorder %s26, 0
      %p221 = por %p219, %p220
      %s222 = ssub.s32 %s20, %s27
      %p223 = scmp.eq.s32.totalorder %s222, 0
      %s225 = sadd.s32 %s224, 1
      %s226 = scalar_select %p223, %s224, %s225
      %p229 = pneg %p223
      %p230 = scmp.eq.s32.totalorder %s20, 1
      %p231 = por %p229, %p230
      %p232 = scmp.ne.s32.totalorder %s224, %s227
      %p233 = scmp.eq.s32.totalorder %s20, 0
      %p234 = por %p232, %p233
      %p235 = scmp.ne.s32.totalorder %s224, %s227
      %p236 = scmp.eq.s32.totalorder %s25, 1
      %p237 = por %p235, %p236
      %p238 = scmp.ne.s32.totalorder %s227, %s228
      %p239 = scmp.eq.s32.totalorder %s25, 0
      %p240 = por %p238, %p239
      %p241 = scmp.ne.s32.totalorder %s227, %s228
      %p242 = scmp.eq.s32.totalorder %s26, 1
      %p243 = por %p241, %p242
      %p245 = scmp.ne.s32.totalorder %s228, %s244
      %p246 = scmp.eq.s32.totalorder %s26, 0
      %p247 = por %p245, %p246
      %p248 = scmp.le.s32.totalorder 1, %s20
      %p249 = scmp.lt.s32.totalorder %s20, 3
      %p250 = pnand %p248, %p249
      %p251 = pneg %p250
      // Predicated region
      $region9: #{train_nn_forward.1} parent=5 // pred_check
        _
      $region10: #{train_nn_forward.1} parent=5 // pred_check_branch
        %253 = sbr.rel (%p250) target = $region12
      $region11: #{train_nn_forward.1} parent=5 // pred_region
        %s254 = ssub.s32 %s20, 1
        // Predicated region
        $region13: #{train_nn_forward.1} parent=11 // pred_check
          %p255 = pneg %p67
        $region14: #{train_nn_forward.1} parent=11 // pred_check_branch
          %257 = sbr.rel (%p255) target = $region16
        $region15: #{train_nn_forward.1} parent=11 // pred_region
          _
        $region16: #{train_nn_forward.1} parent=11 // pred_fallthru
          _
        // Predicated region
        $region17: #{train_nn_forward.1} parent=11 // pred_check
          %p258 = pneg %p88
        $region18: #{train_nn_forward.1} parent=11 // pred_check_branch
          %260 = sbr.rel (%p258) target = $region20
        $region19: #{train_nn_forward.1} parent=11 // pred_region
          _
        $region20: #{train_nn_forward.1} parent=11 // pred_fallthru
          _
        // Predicated region
        $region21: #{train_nn_forward.1} parent=11 // pred_check
          %p261 = pneg %p109
        $region22: #{train_nn_forward.1} parent=11 // pred_check_branch
          %263 = sbr.rel (%p261) target = $region24
        $region23: #{train_nn_forward.1} parent=11 // pred_region
          _
        $region24: #{train_nn_forward.1} parent=11 // pred_fallthru
          _
        // Predicated region
        $region25: #{train_nn_forward.1} parent=11 // pred_check
          %p264 = pneg %p130
        $region26: #{train_nn_forward.1} parent=11 // pred_check_branch
          %266 = sbr.rel (%p264) target = $region28
        $region27: #{train_nn_forward.1} parent=11 // pred_region
          _
        $region28: #{train_nn_forward.1} parent=11 // pred_fallthru
          _
        // Predicated region
        $region29: #{train_nn_forward.1} parent=11 // pred_check
          %p267 = pneg %p151
        $region30: #{train_nn_forward.1} parent=11 // pred_check_branch
          %269 = sbr.rel (%p267) target = $region32
        $region31: #{train_nn_forward.1} parent=11 // pred_region
          _
        $region32: #{train_nn_forward.1} parent=11 // pred_fallthru
          _
        // Predicated region
        $region33: #{train_nn_forward.1} parent=11 // pred_check
          %p270 = pneg %p172
        $region34: #{train_nn_forward.1} parent=11 // pred_check_branch
          %272 = sbr.rel (%p270) target = $region36
        $region35: #{train_nn_forward.1} parent=11 // pred_region
          _
        $region36: #{train_nn_forward.1} parent=11 // pred_fallthru
          _
        // Predicated region
        $region37: #{train_nn_forward.1} parent=11 // pred_check
          %p273 = pneg %p193
        $region38: #{train_nn_forward.1} parent=11 // pred_check_branch
          %275 = sbr.rel (%p273) target = $region40
        $region39: #{train_nn_forward.1} parent=11 // pred_region
          _
        $region40: #{train_nn_forward.1} parent=11 // pred_fallthru
          _
        // Predicated region
        $region41: #{train_nn_forward.1} parent=11 // pred_check
          %p276 = pneg %p214
        $region42: #{train_nn_forward.1} parent=11 // pred_check_branch
          %278 = sbr.rel (%p276) target = $region44
        $region43: #{train_nn_forward.1} parent=11 // pred_region
          _
        $region44: #{train_nn_forward.1} parent=11 // pred_fallthru
          _
      $region12: #{train_nn_forward.1} parent=5 // pred_fallthru
        _
      %p279 = scmp.lt.s32.totalorder %s20, 2
      // Predicated region
      $region45: #{train_nn_forward.1} parent=5 // pred_check
        %p280 = pneg %p279
      $region46: #{train_nn_forward.1} parent=5 // pred_check_branch
        %282 = sbr.rel (%p280) target = $region48
      $region47: #{train_nn_forward.1} parent=5 // pred_region
        // Predicated region
        $region49: #{train_nn_forward.1} parent=47 // pred_check
          %p283 = pneg %p40
        $region50: #{train_nn_forward.1} parent=47 // pred_check_branch
          %285 = sbr.rel (%p283) target = $region52
        $region51: #{train_nn_forward.1} parent=47 // pred_region
          %s286 = smul.u32 32, %s20
          %p287 = scmp.lt.s32.totalorder %s286, 63
          %s288 = scalar_select %p287, %s286, 63
          %s289 = smul.addr %s288, 8
          %s290 = scalar_lea.vmem %s0, %s289
          %s291 = smul.u32 32, %s20
        $region52: #{train_nn_forward.1} parent=47 // pred_fallthru
          _
      $region48: #{train_nn_forward.1} parent=5 // pred_fallthru
        _
      %p292 = scmp.le.s32.totalorder 1, %s20
      %p293 = scmp.lt.s32.totalorder %s20, 3
      %p294 = pnand %p292, %p293
      %p295 = pneg %p294
      // Predicated region
      $region53: #{train_nn_forward.1} parent=5 // pred_check
        _
      $region54: #{train_nn_forward.1} parent=5 // pred_check_branch
        %297 = sbr.rel (%p294) target = $region56
      $region55: #{train_nn_forward.1} parent=5 // pred_region
        %s298 = ssub.s32 %s20, 1
        %s299 = smul.u32 32, %s25
        %p300 = scmp.lt.s32.totalorder %s299, 63
        %s301 = scalar_select %p300, %s299, 63
        %s302 = smul.addr %s301, 8
        %s303 = scalar_lea.vmem %s0, %s302
        %p304 = pneg %p46
        %p305 = pneg %p43
        %p306 = pneg %p67
        %p307 = pneg %p64
        %p308 = pneg %p88
        %p309 = pneg %p85
        %p310 = pneg %p109
        %p311 = pneg %p106
        %p312 = pneg %p130
        %p313 = pneg %p127
        %p314 = pneg %p151
        %p315 = pneg %p148
        %p316 = pneg %p172
        %p317 = pneg %p169
        %p318 = pneg %p193
        %p319 = pneg %p190
        %p320 = pneg %p214
        %p321 = pneg %p211
        %p322 = pneg %p240
        %p323 = pneg %p237
        %s324 = sand.u32 %s227, 1
        %s325 = scalar_lea.sflag [#allocation4], %s324
        %s326 = sand.u32 %s227, 1
        %s327 = smul.addr %s326, 2
        %s328 = scalar_lea.vmem [#allocation3], %s327
        %s329 = smul.u32 32, %s25
        %p330 = scmp.lt.s32.totalorder %s329, 63
        %s331 = scalar_select %p330, %s329, 63
        %s332 = smul.addr %s331, 8
        %s333 = scalar_lea.vmem %s0, %s332
        %s334 = smul.u32 32, %s25
        %s335 = smul.u32 2, %s25
        %v336 = vld [vmem:[%s333] sm:$0xff]
        %v337 = vld [vmem:[%s333 + $0x8] sm:$0xff]
        %v338 = vld [vmem:[%s333 + $0x10] sm:$0xff]
        %v339 = vld [vmem:[%s333 + $0x18] sm:$0xff]
        %v340 = vld [vmem:[%s333 + $0x20] sm:$0xff]
        %v341 = vld [vmem:[%s333 + $0x28] sm:$0xff]
        %v342 = vld [vmem:[%s333 + $0x30] sm:$0xff]
        %v343 = vld [vmem:[%s333 + $0x38] sm:$0xff]
        %v344 = vld [vmem:[%s333 + $0x40] sm:$0xff]
        %v345 = vld [vmem:[%s333 + $0x48] sm:$0xff]
        %v346 = vld [vmem:[%s333 + $0x50] sm:$0xff]
        %v347 = vld [vmem:[%s333 + $0x58] sm:$0xff]
        %v348 = vld [vmem:[%s333 + $0x60] sm:$0xff]
        %v349 = vld [vmem:[%s333 + $0x68] sm:$0xff]
        %v350 = vld [vmem:[%s333 + $0x70] sm:$0xff]
        %v351 = vld [vmem:[%s333 + $0x78] sm:$0xff]
        %v352 = vld [vmem:[%s333 + $0x80] sm:$0xff]
        %v353 = vld [vmem:[%s333 + $0x88] sm:$0xff]
        %v354 = vld [vmem:[%s333 + $0x90] sm:$0xff]
        %v355 = vld [vmem:[%s333 + $0x98] sm:$0xff]
        %v356 = vld [vmem:[%s333 + $0xa0] sm:$0xff]
        %v357 = vld [vmem:[%s333 + $0xa8] sm:$0xff]
        %v358 = vld [vmem:[%s333 + $0xb0] sm:$0xff]
        %v359 = vld [vmem:[%s333 + $0xb8] sm:$0xff]
        %v360 = vld [vmem:[%s333 + $0xc0] sm:$0xff]
        %v361 = vld [vmem:[%s333 + $0xc8] sm:$0xff]
        %v362 = vld [vmem:[%s333 + $0xd0] sm:$0xff]
        %v363 = vld [vmem:[%s333 + $0xd8] sm:$0xff]
        %v364 = vld [vmem:[%s333 + $0xe0] sm:$0xff]
        %v365 = vld [vmem:[%s333 + $0xe8] sm:$0xff]
        %v366 = vld [vmem:[%s333 + $0xf0] sm:$0xff]
        %v367 = vld [vmem:[%s333 + $0xf8] sm:$0xff]
        %v368 = vld [vmem:[%s1] sm:$0xff]
        %v369 = vld [vmem:[%s1 + $0x8] sm:$0xff]
        %v370 = vld [vmem:[%s1 + $0x10] sm:$0xff]
        %v371 = vld [vmem:[%s1 + $0x18] sm:$0xff]
        %v372 = vld [vmem:[%s5] sm:$0xff]
        %v373 = vld [vmem:[%s5 + $0x8] sm:$0xff]
        %v374 = vld [vmem:[%s5 + $0x10] sm:$0xff]
        %v375 = vld [vmem:[%s5 + $0x18] sm:$0xff]
        %377 = vset.pattern.permute.xlu0 0
        %378 = vperm.xlu0 %377, %v372
        %v379 = vpop.permute.xlu0 %378
        %382 = vset.pattern.permute.xlu0 0
        %383 = vperm.xlu0 %382, %v373
        %v384 = vpop.permute.xlu0 %383
        %387 = vset.pattern.permute.xlu0 0
        %388 = vperm.xlu0 %387, %v374
        %v389 = vpop.permute.xlu0 %388
        %392 = vset.pattern.permute.xlu0 0
        %393 = vperm.xlu0 %392, %v375
        %v394 = vpop.permute.xlu0 %393
        %vm396 = vcmask 130048
        %v398 = vsel %vm396, %v368, 0
        %v401 = vsel %vm396, %v369, 0
        %v404 = vsel %vm396, %v370, 0
        %v407 = vsel %vm396, %v371, 0
        %v410 = vsel %vm396, %v336, 0
        %v413 = vsel %vm396, %v337, 0
        %v416 = vsel %vm396, %v338, 0
        %v419 = vsel %vm396, %v339, 0
        %v422 = vsel %vm396, %v340, 0
        %v425 = vsel %vm396, %v341, 0
        %v428 = vsel %vm396, %v342, 0
        %v431 = vsel %vm396, %v343, 0
        %v434 = vsel %vm396, %v344, 0
        %v437 = vsel %vm396, %v345, 0
        %v440 = vsel %vm396, %v346, 0
        %v443 = vsel %vm396, %v347, 0
        %v446 = vsel %vm396, %v348, 0
        %v449 = vsel %vm396, %v349, 0
        %v452 = vsel %vm396, %v350, 0
        %v455 = vsel %vm396, %v351, 0
        %v458 = vsel %vm396, %v352, 0
        %v461 = vsel %vm396, %v353, 0
        %v464 = vsel %vm396, %v354, 0
        %v467 = vsel %vm396, %v355, 0
        %v470 = vsel %vm396, %v356, 0
        %v473 = vsel %vm396, %v357, 0
        %v476 = vsel %vm396, %v358, 0
        %v479 = vsel %vm396, %v359, 0
        %v482 = vsel %vm396, %v360, 0
        %v485 = vsel %vm396, %v361, 0
        %v488 = vsel %vm396, %v362, 0
        %v491 = vsel %vm396, %v363, 0
        %v494 = vsel %vm396, %v364, 0
        %v497 = vsel %vm396, %v365, 0
        %v500 = vsel %vm396, %v366, 0
        %v503 = vsel %vm396, %v367, 0
        %505 = vmatprep.subr.mxu0 0.0
        %506 = vmatpush1.xpose.msra.mxu0 %v455
        %507 = vmatprep.subr.mxu0 0.0
        %508 = vmatpush1.xpose.msra.mxu0 %v452
        %509 = vmatprep.subr.mxu0 0.0
        %510 = vmatpush1.xpose.msra.mxu0 %v449
        %511 = vmatprep.subr.mxu0 0.0
        %512 = vmatpush1.xpose.msra.mxu0 %v446
        %513 = vmatprep.subr.mxu0 0.0
        %514 = vmatpush1.xpose.msra.mxu0 %v443
        %515 = vmatprep.subr.mxu0 0.0
        %516 = vmatpush1.xpose.msra.mxu0 %v440
        %517 = vmatprep.subr.mxu0 0.0
        %518 = vmatpush1.xpose.msra.mxu0 %v437
        %519 = vmatprep.subr.mxu0 0.0
        %520 = vmatpush1.xpose.msra.mxu0 %v434
        %521 = vmatprep.subr.mxu0 0.0
        %522 = vmatpush1.xpose.msra.mxu0 %v431
        %523 = vmatprep.subr.mxu0 0.0
        %524 = vmatpush1.xpose.msra.mxu0 %v428
        %525 = vmatprep.subr.mxu0 0.0
        %526 = vmatpush1.xpose.msra.mxu0 %v425
        %527 = vmatprep.subr.mxu0 0.0
        %528 = vmatpush1.xpose.msra.mxu0 %v422
        %529 = vmatprep.subr.mxu0 0.0
        %530 = vmatpush1.xpose.msra.mxu0 %v419
        %531 = vmatprep.subr.mxu0 0.0
        %532 = vmatpush1.xpose.msra.mxu0 %v416
        %533 = vmatprep.subr.mxu0 0.0
        %534 = vmatpush1.xpose.msra.mxu0 %v413
        %535 = vmatprep.subr.mxu0 0.0
        %536 = vmatpush1.xpose.msra.mxu0 %v410
        %537 = vmatprep.subr.mxu0 0.0
        %538 = vmatpush2.xpose.msra.mxu0 %v503
        %539 = vmatprep.subr.mxu0 0.0
        %540 = vmatpush2.xpose.msra.mxu0 %v500
        %541 = vmatprep.subr.mxu0 0.0
        %542 = vmatpush2.xpose.msra.mxu0 %v497
        %543 = vmatprep.subr.mxu0 0.0
        %544 = vmatpush2.xpose.msra.mxu0 %v494
        %545 = vmatprep.subr.mxu0 0.0
        %546 = vmatpush2.xpose.msra.mxu0 %v491
        %547 = vmatprep.subr.mxu0 0.0
        %548 = vmatpush2.xpose.msra.mxu0 %v488
        %549 = vmatprep.subr.mxu0 0.0
        %550 = vmatpush2.xpose.msra.mxu0 %v485
        %551 = vmatprep.subr.mxu0 0.0
        %552 = vmatpush2.xpose.msra.mxu0 %v482
        %553 = vmatprep.subr.mxu0 0.0
        %554 = vmatpush2.xpose.msra.mxu0 %v479
        %555 = vmatprep.subr.mxu0 0.0
        %556 = vmatpush2.xpose.msra.mxu0 %v476
        %557 = vmatprep.subr.mxu0 0.0
        %558 = vmatpush2.xpose.msra.mxu0 %v473
        %559 = vmatprep.subr.mxu0 0.0
        %560 = vmatpush2.xpose.msra.mxu0 %v470
        %561 = vmatprep.subr.mxu0 0.0
        %562 = vmatpush2.xpose.msra.mxu0 %v467
        %563 = vmatprep.subr.mxu0 0.0
        %564 = vmatpush2.xpose.msra.mxu0 %v464
        %565 = vmatprep.subr.mxu0 0.0
        %566 = vmatpush2.xpose.msra.mxu0 %v461
        %567 = vmatprep.subr.mxu0 0.0
        %568 = vmatpush2.xpose.msra.mxu0 %v458
        %569 = vmatprep.mubr.f32.mxu0 0.0
        %570 = vmatmul.mubr.f32.gmra.mxu0 %v398
        %v571 = vpop.f32.mrf.mxu0
        %v572 = vadd.f32 %v379, %v571
        %v573 = vpop.f32.mrf.mxu0
        %v574 = vadd.f32 %v379, %v573
        %575 = vmatprep.mubr.f32.mxu0 0.0
        %576 = vmatmul.mubr.f32.gmra.mxu0 %v401
        %v577 = vpop.f32.mrf.mxu0
        %v578 = vadd.f32 %v384, %v577
        %v579 = vpop.f32.mrf.mxu0
        %v580 = vadd.f32 %v384, %v579
        %581 = vmatprep.mubr.f32.mxu0 0.0
        %582 = vmatmul.mubr.f32.gmra.mxu0 %v404
        %v583 = vpop.f32.mrf.mxu0
        %v584 = vadd.f32 %v389, %v583
        %v585 = vpop.f32.mrf.mxu0
        %v586 = vadd.f32 %v389, %v585
        %587 = vmatprep.mubr.f32.mxu0 0.0
        %588 = vmatmul.mubr.f32.gmra.mxu0 %v407
        %v589 = vpop.f32.mrf.mxu0
        %v590 = vadd.f32 %v394, %v589
        %v591 = vpop.f32.mrf.mxu0
        %v592 = vadd.f32 %v394, %v591
        %593 = vdwg.mxu0
        %v594 = vld [vmem:[%s2] sm:$0xff]
        %v595 = vld [vmem:[%s2 + $0x8] sm:$0xff]
        %v596 = vld [vmem:[%s2 + $0x10] sm:$0xff]
        %v597 = vld [vmem:[%s2 + $0x18] sm:$0xff]
        %v598 = vld [vmem:[%s6] sm:$0xff]
        %v599 = vld [vmem:[%s6 + $0x8] sm:$0xff]
        %v600 = vld [vmem:[%s6 + $0x10] sm:$0xff]
        %v601 = vld [vmem:[%s6 + $0x18] sm:$0xff]
        %603 = vset.pattern.permute.xlu0 0
        %604 = vperm.xlu0 %603, %v598
        %v605 = vpop.permute.xlu0 %604
        %608 = vset.pattern.permute.xlu0 0
        %609 = vperm.xlu0 %608, %v599
        %v610 = vpop.permute.xlu0 %609
        %613 = vset.pattern.permute.xlu0 0
        %614 = vperm.xlu0 %613, %v600
        %v615 = vpop.permute.xlu0 %614
        %618 = vset.pattern.permute.xlu0 0
        %619 = vperm.xlu0 %618, %v601
        %v620 = vpop.permute.xlu0 %619
        %vm622 = vcmask 261120
        %v624 = vsel %vm622, %v594, 0
        %v627 = vsel %vm622, %v595, 0
        %v630 = vsel %vm622, %v596, 0
        %v633 = vsel %vm622, %v597, 0
        %635 = vmatprep.subr.mxu0 0.0
        %636 = vmatpush1.msra.mxu0 0.0
        %637 = vmatprep.subr.mxu0 0.0
        %638 = vmatpush1.msra.mxu0 0.0
        %639 = vmatprep.subr.mxu0 0.0
        %640 = vmatpush1.msra.mxu0 0.0
        %641 = vmatprep.subr.mxu0 0.0
        %642 = vmatpush1.msra.mxu0 0.0
        %643 = vmatprep.subr.mxu0 0.0
        %644 = vmatpush1.msra.mxu0 0.0
        %645 = vmatprep.subr.mxu0 0.0
        %646 = vmatpush1.msra.mxu0 0.0
        %647 = vmatprep.subr.mxu0 0.0
        %648 = vmatpush1.msra.mxu0 0.0
        %649 = vmatprep.subr.mxu0 0.0
        %650 = vmatpush1.msra.mxu0 0.0
        %651 = vmatprep.subr.mxu0 0.0
        %652 = vmatpush1.msra.mxu0 0.0
        %653 = vmatprep.subr.mxu0 0.0
        %654 = vmatpush1.msra.mxu0 0.0
        %655 = vmatprep.subr.mxu0 0.0
        %656 = vmatpush1.msra.mxu0 0.0
        %657 = vmatprep.subr.mxu0 0.0
        %658 = vmatpush1.msra.mxu0 0.0
        %659 = vmatprep.subr.mxu0 %v592
        %660 = vmatpush1.msra.mxu0 %v590
        %661 = vmatprep.subr.mxu0 %v586
        %662 = vmatpush1.msra.mxu0 %v584
        %663 = vmatprep.subr.mxu0 %v580
        %664 = vmatpush1.msra.mxu0 %v578
        %665 = vmatprep.subr.mxu0 %v574
        %666 = vmatpush1.msra.mxu0 %v572
        %667 = vmatprep.subr.mxu0 0.0
        %668 = vmatpush2.msra.mxu0 0.0
        %669 = vmatprep.subr.mxu0 0.0
        %670 = vmatpush2.msra.mxu0 0.0
        %671 = vmatprep.subr.mxu0 0.0
        %672 = vmatpush2.msra.mxu0 0.0
        %673 = vmatprep.subr.mxu0 0.0
        %674 = vmatpush2.msra.mxu0 0.0
        %675 = vmatprep.subr.mxu0 0.0
        %676 = vmatpush2.msra.mxu0 0.0
        %677 = vmatprep.subr.mxu0 0.0
        %678 = vmatpush2.msra.mxu0 0.0
        %679 = vmatprep.subr.mxu0 0.0
        %680 = vmatpush2.msra.mxu0 0.0
        %681 = vmatprep.subr.mxu0 0.0
        %682 = vmatpush2.msra.mxu0 0.0
        %683 = vmatprep.subr.mxu0 0.0
        %684 = vmatpush2.msra.mxu0 0.0
        %685 = vmatprep.subr.mxu0 0.0
        %686 = vmatpush2.msra.mxu0 0.0
        %687 = vmatprep.subr.mxu0 0.0
        %688 = vmatpush2.msra.mxu0 0.0
        %689 = vmatprep.subr.mxu0 0.0
        %690 = vmatpush2.msra.mxu0 0.0
        %691 = vmatprep.subr.mxu0 0.0
        %692 = vmatpush2.msra.mxu0 0.0
        %693 = vmatprep.subr.mxu0 0.0
        %694 = vmatpush2.msra.mxu0 0.0
        %695 = vmatprep.subr.mxu0 0.0
        %696 = vmatpush2.msra.mxu0 0.0
        %697 = vmatprep.subr.mxu0 0.0
        %698 = vmatpush2.msra.mxu0 0.0
        %699 = vmatprep.mubr.f32.mxu0 0.0
        %700 = vmatmul.mubr.f32.gmra.mxu0 %v624
        %v701 = vpop.f32.mrf.mxu0
        %v702 = vadd.f32 %v605, %v701
        %v703 = vpop.f32.mrf.mxu0
        %v704 = vadd.f32 %v605, %v703
        %705 = vmatprep.mubr.f32.mxu0 0.0
        %706 = vmatmul.mubr.f32.gmra.mxu0 %v627
        %v707 = vpop.f32.mrf.mxu0
        %v708 = vadd.f32 %v610, %v707
        %v709 = vpop.f32.mrf.mxu0
        %v710 = vadd.f32 %v610, %v709
        %711 = vmatprep.mubr.f32.mxu0 0.0
        %712 = vmatmul.mubr.f32.gmra.mxu0 %v630
        %v713 = vpop.f32.mrf.mxu0
        %v714 = vadd.f32 %v615, %v713
        %v715 = vpop.f32.mrf.mxu0
        %v716 = vadd.f32 %v615, %v715
        %717 = vmatprep.mubr.f32.mxu0 0.0
        %718 = vmatmul.mubr.f32.gmra.mxu0 %v633
        %v719 = vpop.f32.mrf.mxu0
        %v720 = vadd.f32 %v620, %v719
        %v721 = vpop.f32.mrf.mxu0
        %v722 = vadd.f32 %v620, %v721
        %723 = vdwg.mxu0
        %v724 = vmax.f32 %v702, 0.0
        %v725 = vmax.f32 %v704, 0.0
        %v726 = vmax.f32 %v708, 0.0
        %v727 = vmax.f32 %v710, 0.0
        %v728 = vmax.f32 %v714, 0.0
        %v729 = vmax.f32 %v716, 0.0
        %v730 = vmax.f32 %v720, 0.0
        %v731 = vmax.f32 %v722, 0.0
        %v732 = vld [vmem:[%s3] sm:$0xff]
        %v733 = vld [vmem:[%s3 + $0x8] sm:$0xff]
        %v734 = vld [vmem:[%s3 + $0x10] sm:$0xff]
        %v735 = vld [vmem:[%s3 + $0x18] sm:$0xff]
        %v736 = vld [vmem:[%s7] sm:$0xff]
        %v737 = vld [vmem:[%s7 + $0x8] sm:$0xff]
        %v738 = vld [vmem:[%s7 + $0x10] sm:$0xff]
        %v739 = vld [vmem:[%s7 + $0x18] sm:$0xff]
        %741 = vset.pattern.permute.xlu0 0
        %742 = vperm.xlu0 %741, %v736
        %v743 = vpop.permute.xlu0 %742
        %746 = vset.pattern.permute.xlu0 0
        %747 = vperm.xlu0 %746, %v737
        %v748 = vpop.permute.xlu0 %747
        %751 = vset.pattern.permute.xlu0 0
        %752 = vperm.xlu0 %751, %v738
        %v753 = vpop.permute.xlu0 %752
        %756 = vset.pattern.permute.xlu0 0
        %757 = vperm.xlu0 %756, %v739
        %v758 = vpop.permute.xlu0 %757
        %v761 = vsel %vm622, %v732, 0
        %v764 = vsel %vm622, %v733, 0
        %v767 = vsel %vm622, %v734, 0
        %v770 = vsel %vm622, %v735, 0
        %772 = vmatprep.subr.mxu0 0.0
        %773 = vmatpush1.msra.mxu0 0.0
        %774 = vmatprep.subr.mxu0 0.0
        %775 = vmatpush1.msra.mxu0 0.0
        %776 = vmatprep.subr.mxu0 0.0
        %777 = vmatpush1.msra.mxu0 0.0
        %778 = vmatprep.subr.mxu0 0.0
        %779 = vmatpush1.msra.mxu0 0.0
        %780 = vmatprep.subr.mxu0 0.0
        %781 = vmatpush1.msra.mxu0 0.0
        %782 = vmatprep.subr.mxu0 0.0
        %783 = vmatpush1.msra.mxu0 0.0
        %784 = vmatprep.subr.mxu0 0.0
        %785 = vmatpush1.msra.mxu0 0.0
        %786 = vmatprep.subr.mxu0 0.0
        %787 = vmatpush1.msra.mxu0 0.0
        %788 = vmatprep.subr.mxu0 0.0
        %789 = vmatpush1.msra.mxu0 0.0
        %790 = vmatprep.subr.mxu0 0.0
        %791 = vmatpush1.msra.mxu0 0.0
        %792 = vmatprep.subr.mxu0 0.0
        %793 = vmatpush1.msra.mxu0 0.0
        %794 = vmatprep.subr.mxu0 0.0
        %795 = vmatpush1.msra.mxu0 0.0
        %796 = vmatprep.subr.mxu0 %v731
        %797 = vmatpush1.msra.mxu0 %v730
        %798 = vmatprep.subr.mxu0 %v729
        %799 = vmatpush1.msra.mxu0 %v728
        %800 = vmatprep.subr.mxu0 %v727
        %801 = vmatpush1.msra.mxu0 %v726
        %802 = vmatprep.subr.mxu0 %v725
        %803 = vmatpush1.msra.mxu0 %v724
        %804 = vmatprep.subr.mxu0 0.0
        %805 = vmatpush2.msra.mxu0 0.0
        %806 = vmatprep.subr.mxu0 0.0
        %807 = vmatpush2.msra.mxu0 0.0
        %808 = vmatprep.subr.mxu0 0.0
        %809 = vmatpush2.msra.mxu0 0.0
        %810 = vmatprep.subr.mxu0 0.0
        %811 = vmatpush2.msra.mxu0 0.0
        %812 = vmatprep.subr.mxu0 0.0
        %813 = vmatpush2.msra.mxu0 0.0
        %814 = vmatprep.subr.mxu0 0.0
        %815 = vmatpush2.msra.mxu0 0.0
        %816 = vmatprep.subr.mxu0 0.0
        %817 = vmatpush2.msra.mxu0 0.0
        %818 = vmatprep.subr.mxu0 0.0
        %819 = vmatpush2.msra.mxu0 0.0
        %820 = vmatprep.subr.mxu0 0.0
        %821 = vmatpush2.msra.mxu0 0.0
        %822 = vmatprep.subr.mxu0 0.0
        %823 = vmatpush2.msra.mxu0 0.0
        %824 = vmatprep.subr.mxu0 0.0
        %825 = vmatpush2.msra.mxu0 0.0
        %826 = vmatprep.subr.mxu0 0.0
        %827 = vmatpush2.msra.mxu0 0.0
        %828 = vmatprep.subr.mxu0 0.0
        %829 = vmatpush2.msra.mxu0 0.0
        %830 = vmatprep.subr.mxu0 0.0
        %831 = vmatpush2.msra.mxu0 0.0
        %832 = vmatprep.subr.mxu0 0.0
        %833 = vmatpush2.msra.mxu0 0.0
        %834 = vmatprep.subr.mxu0 0.0
        %835 = vmatpush2.msra.mxu0 0.0
        %836 = vmatprep.mubr.f32.mxu0 0.0
        %837 = vmatmul.mubr.f32.gmra.mxu0 %v761
        %v838 = vpop.f32.mrf.mxu0
        %v839 = vadd.f32 %v743, %v838
        %v840 = vpop.f32.mrf.mxu0
        %v841 = vadd.f32 %v743, %v840
        %842 = vmatprep.mubr.f32.mxu0 0.0
        %843 = vmatmul.mubr.f32.gmra.mxu0 %v764
        %v844 = vpop.f32.mrf.mxu0
        %v845 = vadd.f32 %v748, %v844
        %v846 = vpop.f32.mrf.mxu0
        %v847 = vadd.f32 %v748, %v846
        %848 = vmatprep.mubr.f32.mxu0 0.0
        %849 = vmatmul.mubr.f32.gmra.mxu0 %v767
        %v850 = vpop.f32.mrf.mxu0
        %v851 = vadd.f32 %v753, %v850
        %v852 = vpop.f32.mrf.mxu0
        %v853 = vadd.f32 %v753, %v852
        %854 = vmatprep.mubr.f32.mxu0 0.0
        %855 = vmatmul.mubr.f32.gmra.mxu0 %v770
        %v856 = vpop.f32.mrf.mxu0
        %v857 = vadd.f32 %v758, %v856
        %v858 = vpop.f32.mrf.mxu0
        %v859 = vadd.f32 %v758, %v858
        %860 = vdwg.mxu0
        %v861 = vmax.f32 %v839, 0.0
        %v862 = vmax.f32 %v841, 0.0
        %v863 = vmax.f32 %v845, 0.0
        %v864 = vmax.f32 %v847, 0.0
        %v865 = vmax.f32 %v851, 0.0
        %v866 = vmax.f32 %v853, 0.0
        %v867 = vmax.f32 %v857, 0.0
        %v868 = vmax.f32 %v859, 0.0
        %v869 = vld [vmem:[%s4] sm:$0xff]
        %v870 = vld [vmem:[%s4 + $0x8] sm:$0xff]
        %v871 = vld [vmem:[%s4 + $0x10] sm:$0xff]
        %v872 = vld [vmem:[%s4 + $0x18] sm:$0xff]
        %874 = vset.pattern.permute.xlu0 0
        %875 = vperm.xlu0 %874, %v869
        %v876 = vpop.permute.xlu0 %875
        %879 = vset.pattern.permute.xlu0 0
        %880 = vperm.xlu0 %879, %v870
        %v881 = vpop.permute.xlu0 %880
        %884 = vset.pattern.permute.xlu0 0
        %885 = vperm.xlu0 %884, %v871
        %v886 = vpop.permute.xlu0 %885
        %889 = vset.pattern.permute.xlu0 0
        %890 = vperm.xlu0 %889, %v872
        %v891 = vpop.permute.xlu0 %890
        %v893 = vmul.f32 %v861, %v876
        %v894 = vmul.f32 %v862, %v876
        %v895 = vmul.f32 %v863, %v881
        %v896 = vmul.f32 %v864, %v881
        %v897 = vmul.f32 %v865, %v886
        %v898 = vmul.f32 %v866, %v886
        %v899 = vmul.f32 %v867, %v891
        %v900 = vmul.f32 %v868, %v891
        %v901 = vadd.f32 %v893, %v895
        %v902 = vadd.f32 %v901, %v897
        %v903 = vadd.f32 %v902, %v899
        %v904 = vrot.slane %v903, 4
        %v905 = vadd.f32 %v903, %v904
        %v906 = vrot.slane %v905, 2
        %v907 = vadd.f32 %v905, %v906
        %v908 = vrot.slane %v907, 1
        %v909 = vadd.f32 %v907, %v908
        %v910 = vadd.f32 %v894, %v896
        %v911 = vadd.f32 %v910, %v898
        %v912 = vadd.f32 %v911, %v900
        %v913 = vrot.slane %v912, 4
        %v914 = vadd.f32 %v912, %v913
        %v915 = vrot.slane %v914, 2
        %v916 = vadd.f32 %v914, %v915
        %v917 = vrot.slane %v916, 1
        %v918 = vadd.f32 %v916, %v917
        %v919 = vld [vmem:[#allocation2] sm:$0x1]
        %921 = vset.pattern.permute.xlu0 0
        %922 = vperm.xlu0 %921, %v919
        %v923 = vpop.permute.xlu0 %922
        %v925 = vlaneseq
        %v926 = vshrl.u32 %v925, 7
        %v927 = vsub.s32 0, %v926
        %v928 = vrot.slane %v923, %v927
        %v929 = vadd.f32 %v909, %v928
        %v930 = vadd.f32 %v918, %v928
        %v933 = vcombine.low %v929, %v930
        %v935 = vunpack.c.l.s4 1966171168
        %v936 = vunpack.c.0.s8 %v935
        %v937 = vlaneseq
        %v938 = vshrl.u32 %v937, 7
        %v939 = vsub.s32 %v936, %v938
        %v940 = vrot.slane %v933, %v939
        %v942 = vunpack.c.l.s4 1966171168
        %v943 = vunpack.c.0.s8 %v942
        %v944 = vlaneseq
        %v945 = vshrl.u32 %v944, 7
        %v946 = vsub.s32 %v943, %v945
        %v947 = vrot.slane %v940, %v946
        %v949 = vlaneseq
        %vm950 = vcmp.ge.s32.totalorder %v949, 0
        %vm951 = vcmp.lt.s32.totalorder %v949, 256
        %vm952 = vmand %vm950, %vm951
        %953 = vst.msk [vmem:[%s328] sm:$0x3] %vm952, %v947
        %s954 = sand.u32 %s227, 1
        %s955 = scalar_lea.sflag [#allocation4], %s954
        %s956 = sand.u32 %s227, 1
        %s957 = smul.addr %s956, 2
        %s958 = scalar_lea.vmem [#allocation3], %s957
        // Predicated region
        $region57: #{train_nn_forward.1} parent=55 // pred_check
          %p959 = pneg %p237
        $region58: #{train_nn_forward.1} parent=55 // pred_check_branch
          %961 = sbr.rel (%p959) target = $region60
        $region59: #{train_nn_forward.1} parent=55 // pred_region
          %s962 = smul.u32 2, %s25
          %s964 = ssub.s32 32, 32
          %965 = vsyncadd %s955, %s964
          %s966 = smul.addr %s962, 16
          %s967 = scalar_lea.hbm %s9, %s966
          %s969 = sshll.u32 %s958, 4
          %s970 = int_to_ptr.vmem [resolvable:$true] %s969
          %972 = dma.vmem_to_hbm [thread:$0]  %s970, 32, %s967, %s955
        $region60: #{train_nn_forward.1} parent=55 // pred_fallthru
          _
      $region56: #{train_nn_forward.1} parent=5 // pred_fallthru
        _
      %p973 = scmp.le.s32.totalorder 2, %s20
      // Predicated region
      $region61: #{train_nn_forward.1} parent=5 // pred_check
        %p974 = pneg %p973
      $region62: #{train_nn_forward.1} parent=5 // pred_check_branch
        %976 = sbr.rel (%p974) target = $region64
      $region63: #{train_nn_forward.1} parent=5 // pred_region
        %s977 = ssub.s32 %s20, 2
        // Predicated region
        $region65: #{train_nn_forward.1} parent=63 // pred_check
          %p978 = pneg %p243
        $region66: #{train_nn_forward.1} parent=63 // pred_check_branch
          %980 = sbr.rel (%p978) target = $region68
        $region67: #{train_nn_forward.1} parent=63 // pred_region
          %s981 = sand.u32 %s228, 1
          %s982 = scalar_lea.sflag [#allocation4], %s981
          %s983 = sand.u32 %s228, 1
          %s984 = smul.addr %s983, 2
          %s985 = scalar_lea.vmem [#allocation3], %s984
          %986 = dma.done %s982, 32
        $region68: #{train_nn_forward.1} parent=63 // pred_fallthru
          _
      $region64: #{train_nn_forward.1} parent=5 // pred_fallthru
        _
    $region6: #{train_nn_forward.1} parent=1 // loop_footer
      %s24 = sadd.s32 1, %s20
    $region7: #{train_nn_forward.1} parent=1 // loop_footer_branch
      %19 = sbr.rel target = $region3
    $region8: #{train_nn_forward.1} parent=1 // loop_exit
      _
    %987 = vsyncpa [#allocation4], 1
    %s988 = scalar_lea.sflag [#allocation4], 1
    %989 = vsyncpa %s988, 1

</llo_original>
